<compile_context>
chip_gen: v6e
topology: v6e:2x2x1
jax: 0.10.0
libtpu: 0.0.40
codegen_flags: <defaults>
</compile_context>

<pallas_src>
import math

import jax
import jax.numpy as jnp
from jax.experimental import pallas as pl
from jax.experimental.pallas import tpu as pltpu

ANGLE_SCALE = 2.0 * math.pi   # synthetic dataset.rescale scale (normalized [0,1] -> [0, 2pi])
ANGLE_OFFSET = 0.0            # synthetic dataset.rescale offset (cancels in the difference)
TWO_PI = 2.0 * math.pi
INV_TWO_PI = 1.0 / TWO_PI

LANES = 128                   # vreg lane width
SUBLANES = 8                  # vreg sublane count (f32)
NUM_SPLITS = 2                # leading 'parallel' axis: 2 TCs on v7x, no-op cost on 1-TC chips
MAX_TILE_ROWS = 256           # 256*128*4B = 128 KiB per input block per buffer


def _foref_angle_loss_kernel(p_ref, l_ref, out_ref, acc_ref):
    j = pl.program_id(1)

    @pl.when(j == 0)
    def _():
        acc_ref[...] = jnp.zeros_like(acc_ref)

    # rescale is linear; offsets cancel in the difference, so only the scale remains.
    diff = jnp.abs((p_ref[...] - l_ref[...]) * ANGLE_SCALE)
    # mod 2pi via multiply-by-reciprocal (no f32 divide), reflect > pi into [0, pi].
    diff = diff - jnp.floor(diff * INV_TWO_PI) * TWO_PI
    diff = jnp.where(diff > math.pi, TWO_PI - diff, diff)

    # Per-lane partial sums of squared clamped diff (padded rows are exact zeros,
    # so they contribute nothing). Sublane reduce only; lane reduce happens outside.
    acc_ref[...] += jnp.sum(diff * diff, axis=0, keepdims=True)

    @pl.when(j == pl.num_programs(1) - 1)
    def _():
        out_ref[...] = acc_ref[...]


def foref_angle_loss(prediction, label):
    """prediction, label: (B, F). Returns scalar float32 loss."""
    assert prediction.shape == label.shape and prediction.ndim == 2
    B = prediction.shape[0]

    # Only feature 0 (the FoRef angle) is consumed: slice it before the kernel so we
    # never DMA (or cast) the full (B, F) arrays.
    p = prediction[:, 0].astype(jnp.float32)
    l = label[:, 0].astype(jnp.float32)

    # Lane-dense layout: pad the B angles to (total_rows, 128) f32, tiled over the
    # batch and split across NUM_SPLITS independent partial sums.
    rows_needed = -(-B // LANES)
    rows_per_split = -(-rows_needed // NUM_SPLITS)
    tile_rows = min(MAX_TILE_ROWS, -(-rows_per_split // SUBLANES) * SUBLANES)
    tiles_per_split = -(-rows_per_split // tile_rows)
    total_rows = NUM_SPLITS * tiles_per_split * tile_rows
    n_pad = total_rows * LANES

    p = jnp.pad(p, (0, n_pad - B)).reshape(total_rows, LANES)
    l = jnp.pad(l, (0, n_pad - B)).reshape(total_rows, LANES)

    in_spec = pl.BlockSpec(
        (tile_rows, LANES),
        lambda c, j: (c * tiles_per_split + j, 0),
    )
    # Lane-dense (1, 128) output block per split; written only on the last j step.
    out_spec = pl.BlockSpec((1, LANES), lambda c, j: (0, c))

    partials = pl.pallas_call(
        _foref_angle_loss_kernel,
        out_shape=jax.ShapeDtypeStruct((1, NUM_SPLITS * LANES), jnp.float32),
        grid_spec=pltpu.PrefetchScalarGridSpec(
            num_scalar_prefetch=0,
            grid=(NUM_SPLITS, tiles_per_split),
            in_specs=[in_spec, in_spec],
            out_specs=out_spec,
            scratch_shapes=[pltpu.VMEM((1, LANES), jnp.float32)],
        ),
        compiler_params=pltpu.CompilerParams(
            dimension_semantics=("parallel", "arbitrary"),
            vmem_limit_bytes=16 * 1024 * 1024,
        ),
        cost_estimate=pl.CostEstimate(
            flops=10 * n_pad,
            transcendentals=0,
            bytes_accessed=2 * n_pad * 4 + NUM_SPLITS * LANES * 4,
        ),
    )(p, l)

    # Tiny final reduce; /pi folded into the square and the mean over B applied once.
    return jnp.sum(partials) * (1.0 / (math.pi * math.pi * B))


def _reference_loss(prediction, label):
    """Pure-JAX reference mirroring the PyTorch forward."""
    p = prediction[:, 0].astype(jnp.float32) * ANGLE_SCALE + ANGLE_OFFSET
    l = label[:, 0].astype(jnp.float32) * ANGLE_SCALE + ANGLE_OFFSET
    a = jnp.abs(p - l)
    a = a % TWO_PI
    a = jnp.where(a > math.pi, TWO_PI - a, a)
    a = a / math.pi
    return jnp.mean(a * a)


if __name__ == "__main__":
    key = jax.random.PRNGKey(0)

    # Small shape consistent with the module's (batch, features) inputs.
    k1, k2 = jax.random.split(key)
    B, F = 2, 4
    prediction = jax.random.uniform(k1, (B, F), dtype=jnp.float32)
    label = jax.random.uniform(k2, (B, F), dtype=jnp.float32)
    loss = jax.block_until_ready(foref_angle_loss(prediction, label))
    ref = _reference_loss(prediction, label)
    assert jnp.allclose(loss, ref, rtol=1e-5, atol=1e-6), (loss, ref)

    # Larger, non-multiple batch to exercise padding, multi-tile grid and the 2-way split.
    k3, k4 = jax.random.split(k2)
    B2, F2 = 70001, 4
    prediction2 = jax.random.uniform(k3, (B2, F2), dtype=jnp.float32)
    label2 = jax.random.uniform(k4, (B2, F2), dtype=jnp.float32)
    loss2 = jax.block_until_ready(foref_angle_loss(prediction2, label2))
    ref2 = _reference_loss(prediction2, label2)
    assert jnp.allclose(loss2, ref2, rtol=1e-4, atol=1e-6), (loss2, ref2)

    print("KERNEL_OK")
</pallas_src>

<mosaic_0001>
module attributes {stable_mosaic.version = 11 : i64} {
  func.func @_foref_angle_loss_kernel(%arg0: i32, %arg1: i32, %arg2: memref<8x128xf32, #tpu.memory_space<vmem>>, %arg3: memref<8x128xf32, #tpu.memory_space<vmem>>, %arg4: memref<1x128xf32, #tpu.memory_space<vmem>>, %arg5: memref<1x128xf32, #tpu.memory_space<vmem>>) attributes {dimension_semantics = [#tpu.dimension_semantics<parallel>, #tpu.dimension_semantics<arbitrary>], iteration_bounds = array<i64: 2, 1>, scalar_prefetch = 0 : i64, scratch_operands = 1 : i64, tpu.core_type = #tpu.core_type<tc>, window_params = [{transform_indices = @transform_0, window_bounds = array<i64: 8, 128>}, {transform_indices = @transform_1, window_bounds = array<i64: 8, 128>}, {transform_indices = @transform_2, window_bounds = array<i64: 1, 128>}]} {
    %c0_i32 = arith.constant 0 : i32
    %0 = arith.cmpi eq, %arg1, %c0_i32 : i32
    %1 = arith.extui %0 : i1 to i32
    %c0_i32_0 = arith.constant 0 : i32
    %2 = arith.cmpi ne, %1, %c0_i32_0 : i32
    scf.if %2 {
      %cst_15 = arith.constant 0.000000e+00 : f32
      %29 = vector.broadcast %cst_15 : f32 to vector<1x128xf32>
      %c0_16 = arith.constant 0 : index
      %c0_17 = arith.constant 0 : index
      %30 = vector.load %arg5[%c0_16, %c0_17] : memref<1x128xf32, #tpu.memory_space<vmem>>, vector<1x128xf32>
      tpu.vector_store %arg5[%c0_16, %c0_17], %29 {strides = array<i32>} : memref<1x128xf32, #tpu.memory_space<vmem>>, vector<1x128xf32>,
    } else {
    }
    %c0 = arith.constant 0 : index
    %c0_1 = arith.constant 0 : index
    %3 = vector.load %arg2[%c0, %c0_1] : memref<8x128xf32, #tpu.memory_space<vmem>>, vector<8x128xf32>
    %c0_2 = arith.constant 0 : index
    %c0_3 = arith.constant 0 : index
    %4 = vector.load %arg3[%c0_2, %c0_3] : memref<8x128xf32, #tpu.memory_space<vmem>>, vector<8x128xf32>
    %5 = arith.subf %3, %4 : vector<8x128xf32>
    %cst = arith.constant 6.28318548 : f32
    %6 = vector.broadcast %cst : f32 to vector<8x128xf32>
    %7 = arith.mulf %5, %6 : vector<8x128xf32>
    %8 = math.absf %7 : vector<8x128xf32>
    %cst_4 = arith.constant 0.159154937 : f32
    %9 = vector.broadcast %cst_4 : f32 to vector<8x128xf32>
    %10 = arith.mulf %8, %9 : vector<8x128xf32>
    %11 = math.floor %10 : vector<8x128xf32>
    %cst_5 = arith.constant 6.28318548 : f32
    %12 = vector.broadcast %cst_5 : f32 to vector<8x128xf32>
    %13 = arith.mulf %11, %12 : vector<8x128xf32>
    %14 = arith.subf %8, %13 : vector<8x128xf32>
    %cst_6 = arith.constant 3.14159274 : f32
    %15 = vector.broadcast %cst_6 : f32 to vector<8x128xf32>
    %16 = arith.cmpf ogt, %14, %15 : vector<8x128xf32>
    %cst_7 = arith.constant 6.28318548 : f32
    %17 = vector.broadcast %cst_7 : f32 to vector<8x128xf32>
    %18 = arith.subf %17, %14 : vector<8x128xf32>
    %19 = arith.select %16, %18, %14 : vector<8x128xi1>, vector<8x128xf32>
    %c0_8 = arith.constant 0 : index
    %c0_9 = arith.constant 0 : index
    %20 = vector.load %arg5[%c0_8, %c0_9] : memref<1x128xf32, #tpu.memory_space<vmem>>, vector<1x128xf32>
    %21 = arith.mulf %19, %19 : vector<8x128xf32>
    %cst_10 = arith.constant dense<0.000000e+00> : vector<128xf32>
    %22 = vector.multi_reduction <add>, %21, %cst_10 [0] : vector<8x128xf32> to vector<128xf32>
    %23 = vector.shape_cast %22 : vector<128xf32> to vector<1x128xf32>
    %24 = arith.addf %20, %23 : vector<1x128xf32>
    %c0_11 = arith.constant 0 : index
    %c0_12 = arith.constant 0 : index
    %25 = vector.load %arg5[%c0_11, %c0_12] : memref<1x128xf32, #tpu.memory_space<vmem>>, vector<1x128xf32>
    tpu.vector_store %arg5[%c0_11, %c0_12], %24 {strides = array<i32>} : memref<1x128xf32, #tpu.memory_space<vmem>>, vector<1x128xf32>,
    %c0_i32_13 = arith.constant 0 : i32
    %26 = arith.cmpi eq, %arg1, %c0_i32_13 : i32
    %27 = arith.extui %26 : i1 to i32
    %c0_i32_14 = arith.constant 0 : i32
    %28 = arith.cmpi ne, %27, %c0_i32_14 : i32
    scf.if %28 {
      %c0_15 = arith.constant 0 : index
      %c0_16 = arith.constant 0 : index
      %29 = vector.load %arg5[%c0_15, %c0_16] : memref<1x128xf32, #tpu.memory_space<vmem>>, vector<1x128xf32>
      %c0_17 = arith.constant 0 : index
      %c0_18 = arith.constant 0 : index
      %30 = vector.load %arg4[%c0_17, %c0_18] : memref<1x128xf32, #tpu.memory_space<vmem>>, vector<1x128xf32>
      tpu.vector_store %arg4[%c0_17, %c0_18], %29 {strides = array<i32>} : memref<1x128xf32, #tpu.memory_space<vmem>>, vector<1x128xf32>,
    } else {
    }
    return
  }
  func.func @transform_0(%arg0: i32, %arg1: i32) -> (i32, i32) {
    %c1_i32 = arith.constant 1 : i32
    %0 = arith.muli %arg0, %c1_i32 : i32
    %1 = arith.addi %0, %arg1 : i32
    %c0_i32 = arith.constant 0 : i32
    %c0_i32_0 = arith.constant 0 : i32
    return %1, %c0_i32 : i32, i32
  }
  func.func @transform_1(%arg0: i32, %arg1: i32) -> (i32, i32) {
    %c1_i32 = arith.constant 1 : i32
    %0 = arith.muli %arg0, %c1_i32 : i32
    %1 = arith.addi %0, %arg1 : i32
    %c0_i32 = arith.constant 0 : i32
    %c0_i32_0 = arith.constant 0 : i32
    return %1, %c0_i32 : i32, i32
  }
  func.func @transform_2(%arg0: i32, %arg1: i32) -> (i32, i32) {
    %c0_i32 = arith.constant 0 : i32
    %c0_i32_0 = arith.constant 0 : i32
    return %c0_i32, %arg0 : i32, i32
  }
}

</mosaic_0001>

<llo_original>
// kernel: tpu_custom_call.1
$region0: #{tpu_custom_call.1}
  #allocation0 [shape = 'u32[]', space=smem, size = 0x4, offset = 0x4, fixed_abs, tag = 'smem constant byte address 0x4 - core index']
  #allocation1 [shape = 'u32[144,128]{1,0:T(1,128)}', space=vmem, size = 0x12000, scoped, tag = 'internal scratch']
  #allocation2 [shape = 'f32[1,128]{1,0:T(1,128)}', space=vmem, size = 0x200, scoped, tag = 'scratch operand']
  %s0 = inlined_call_operand.hbm [shape: f32[16,128], index: 0, kind: input, shape index: {}]
  %s1 = inlined_call_operand.hbm [shape: f32[16,128], index: 1, kind: input, shape index: {}]
  %s2 = inlined_call_operand.hbm [shape: f32[1,256], index: 2, kind: output, shape index: {}]
  %s3 = sld [smem:[#allocation0]]
  $region57: #{tpu_custom_call.1} parent=0
    _
  %s5 = ssub.s32 1, %s3
  %s6 = scalar_select 0, %s5, %s3
  $region1: #{tpu_custom_call.1} parent=0
    #allocation3 [shape = 'u8[8192]{0}', space=vmem, size = 0x2000, scoped, tag = 'input window, operand 0']
    #allocation4 [shape = 's32[2]{0}', space=sflag, size = 0x8, scoped, tag = 'scoped memory for tpu_custom_call.1']
    #allocation5 [shape = 's32[2]{0}', space=sflag, size = 0x8, scoped, tag = 'scoped memory for tpu_custom_call.1']
    #allocation6 [shape = 'u8[8192]{0}', space=vmem, size = 0x2000, scoped, tag = 'input window, operand 1']
    #allocation7 [shape = 's32[2]{0}', space=sflag, size = 0x8, scoped, tag = 'scoped memory for tpu_custom_call.1']
    #allocation8 [shape = 'u8[1024]{0}', space=vmem, size = 0x400, scoped, tag = 'output window, operand 0']
    %7 = vsyncpa [#allocation4], 0
    %s8 = scalar_lea.sflag [#allocation4], 1
    %9 = vsyncpa %s8, 0
    %10 = vsyncpa [#allocation7], 0
    %s11 = scalar_lea.sflag [#allocation7], 1
    %12 = vsyncpa %s11, 0
    %13 = vsyncpa [#allocation5], 0
    %s14 = scalar_lea.sflag [#allocation5], 1
    %15 = vsyncpa %s14, 0
    loop: start=0, step=1, limit=4
    $region2: #{tpu_custom_call.1} parent=1 // loop_pre_header
      _
    $region3: #{tpu_custom_call.1} parent=1 // loop_header
      %s17 = sphi 0, %s21
      %p18 = scmp.ge.s32.totalorder %s17, 4
      %s24 = sphi 0, %s36
      %s25 = sphi 0, %s32
      %s26 = sphi 0, %s24
      %s27 = sphi 0, %s25
      %s28 = sphi 0, %s26
      %s29 = sphi 0, %s27
      %s41 = sphi 0, %s43
      %s44 = sphi 0, %s41
      %s45 = sphi 0, %s44
      %s61 = sphi 0, %s45
      %s69 = sphi 0, %s71
      %s72 = sphi 0, %s69
      %s73 = sphi 0, %s72
      %s89 = sphi 0, %s73
      %s95 = sphi 0, %s97
      %s98 = sphi 0, %s95
      %s99 = sphi 0, %s98
      %s115 = sphi 0, %s99
    $region4: #{tpu_custom_call.1} parent=1 // loop_header_branch
      %20 = sbr.rel (%p18) target = $region8
    $region5: #{tpu_custom_call.1} parent=1 // loop_body
      %s22 = ssub.s32 %s17, 1
      %s23 = ssub.s32 %s17, 2
      %s30 = sadd.s32 1, %s25
      %p31 = scmp.ge.s32.totalorder %s30, 1
      %s32 = scalar_select %p31, 0, %s30
      %s33 = sadd.s32 1, %s24
      %s34 = scalar_select %p31, %s33, %s24
      %p35 = scmp.ge.s32.totalorder %s34, 2
      %s36 = scalar_select %p35, 0, %s34
      %s37 = sadd.s32 %s24, %s25
      %s38 = sadd.s32 %s36, %s32
      %s39 = ssub.s32 %s37, %s38
      %p40 = scmp.eq.s32.totalorder %s39, 0
      %s42 = sadd.s32 %s41, 1
      %s43 = scalar_select %p40, %s41, %s42
      %p46 = pneg %p40
      %p47 = scmp.eq.s32.totalorder %s17, 1
      %p48 = por %p46, %p47
      %p49 = scmp.ne.s32.totalorder %s41, %s44
      %p50 = scmp.eq.s32.totalorder %s17, 0
      %p51 = por %p49, %p50
      %p52 = scmp.ne.s32.totalorder %s41, %s44
      %p53 = scmp.eq.s32.totalorder %s22, 1
      %p54 = por %p52, %p53
      %p55 = scmp.ne.s32.totalorder %s44, %s45
      %p56 = scmp.eq.s32.totalorder %s22, 0
      %p57 = por %p55, %p56
      %p58 = scmp.ne.s32.totalorder %s44, %s45
      %p59 = scmp.eq.s32.totalorder %s23, 1
      %p60 = por %p58, %p59
      %p62 = scmp.ne.s32.totalorder %s45, %s61
      %p63 = scmp.eq.s32.totalorder %s23, 0
      %p64 = por %p62, %p63
      %s65 = sadd.s32 %s24, %s25
      %s66 = sadd.s32 %s36, %s32
      %s67 = ssub.s32 %s65, %s66
      %p68 = scmp.eq.s32.totalorder %s67, 0
      %s70 = sadd.s32 %s69, 1
      %s71 = scalar_select %p68, %s69, %s70
      %p74 = pneg %p68
      %p75 = scmp.eq.s32.totalorder %s17, 1
      %p76 = por %p74, %p75
      %p77 = scmp.ne.s32.totalorder %s69, %s72
      %p78 = scmp.eq.s32.totalorder %s17, 0
      %p79 = por %p77, %p78
      %p80 = scmp.ne.s32.totalorder %s69, %s72
      %p81 = scmp.eq.s32.totalorder %s22, 1
      %p82 = por %p80, %p81
      %p83 = scmp.ne.s32.totalorder %s72, %s73
      %p84 = scmp.eq.s32.totalorder %s22, 0
      %p85 = por %p83, %p84
      %p86 = scmp.ne.s32.totalorder %s72, %s73
      %p87 = scmp.eq.s32.totalorder %s23, 1
      %p88 = por %p86, %p87
      %p90 = scmp.ne.s32.totalorder %s73, %s89
      %p91 = scmp.eq.s32.totalorder %s23, 0
      %p92 = por %p90, %p91
      %s93 = ssub.s32 %s24, %s36
      %p94 = scmp.eq.s32.totalorder %s93, 0
      %s96 = sadd.s32 %s95, 1
      %s97 = scalar_select %p94, %s95, %s96
      %p100 = pneg %p94
      %p101 = scmp.eq.s32.totalorder %s17, 1
      %p102 = por %p100, %p101
      %p103 = scmp.ne.s32.totalorder %s95, %s98
      %p104 = scmp.eq.s32.totalorder %s17, 0
      %p105 = por %p103, %p104
      %p106 = scmp.ne.s32.totalorder %s95, %s98
      %p107 = scmp.eq.s32.totalorder %s22, 1
      %p108 = por %p106, %p107
      %p109 = scmp.ne.s32.totalorder %s98, %s99
      %p110 = scmp.eq.s32.totalorder %s22, 0
      %p111 = por %p109, %p110
      %p112 = scmp.ne.s32.totalorder %s98, %s99
      %p113 = scmp.eq.s32.totalorder %s23, 1
      %p114 = por %p112, %p113
      %p116 = scmp.ne.s32.totalorder %s99, %s115
      %p117 = scmp.eq.s32.totalorder %s23, 0
      %p118 = por %p116, %p117
      %p119 = scmp.le.s32.totalorder 1, %s17
      %p120 = scmp.lt.s32.totalorder %s17, 3
      %p121 = pnand %p119, %p120
      %p122 = pneg %p121
      // Predicated region
      $region9: #{tpu_custom_call.1} parent=5 // pred_check
        _
      $region10: #{tpu_custom_call.1} parent=5 // pred_check_branch
        %124 = sbr.rel (%p121) target = $region12
      $region11: #{tpu_custom_call.1} parent=5 // pred_region
        %s125 = ssub.s32 %s17, 1
      $region12: #{tpu_custom_call.1} parent=5 // pred_fallthru
        _
      %p126 = scmp.lt.s32.totalorder %s17, 2
      // Predicated region
      $region13: #{tpu_custom_call.1} parent=5 // pred_check
        %p127 = pneg %p126
      $region14: #{tpu_custom_call.1} parent=5 // pred_check_branch
        %129 = sbr.rel (%p127) target = $region16
      $region15: #{tpu_custom_call.1} parent=5 // pred_region
        // Predicated region
        $region17: #{tpu_custom_call.1} parent=15 // pred_check
          %p130 = pneg %p51
        $region18: #{tpu_custom_call.1} parent=15 // pred_check_branch
          %132 = sbr.rel (%p130) target = $region20
        $region19: #{tpu_custom_call.1} parent=15 // pred_region
          %s133 = sand.u32 %s41, 1
          %s134 = scalar_lea.sflag [#allocation4], %s133
          %s135 = sand.u32 %s41, 1
          %s136 = smul.addr %s135, 8
          %s137 = scalar_lea.vmem [#allocation3], %s136
          %s138 = sadd.s32 %s24, %s25
          %s140 = ssub.s32 128, 128
          %141 = vsyncadd %s134, %s140
          %s142 = smul.addr %s138, 128
          %s143 = scalar_lea.hbm %s0, %s142
          %s145 = sshll.u32 %s137, 4
          %s146 = int_to_ptr.vmem [resolvable:$true] %s145
          %148 = dma.hbm_to_vmem [thread:$0]  %s143, 128, %s146, %s134
        $region20: #{tpu_custom_call.1} parent=15 // pred_fallthru
          _
        // Predicated region
        $region21: #{tpu_custom_call.1} parent=15 // pred_check
          %p149 = pneg %p79
        $region22: #{tpu_custom_call.1} parent=15 // pred_check_branch
          %151 = sbr.rel (%p149) target = $region24
        $region23: #{tpu_custom_call.1} parent=15 // pred_region
          %s152 = sand.u32 %s69, 1
          %s153 = scalar_lea.sflag [#allocation7], %s152
          %s154 = sand.u32 %s69, 1
          %s155 = smul.addr %s154, 8
          %s156 = scalar_lea.vmem [#allocation6], %s155
          %s157 = sadd.s32 %s24, %s25
          %s159 = ssub.s32 128, 128
          %160 = vsyncadd %s153, %s159
          %s161 = smul.addr %s157, 128
          %s162 = scalar_lea.hbm %s1, %s161
          %s164 = sshll.u32 %s156, 4
          %s165 = int_to_ptr.vmem [resolvable:$true] %s164
          %167 = dma.hbm_to_vmem [thread:$0]  %s162, 128, %s165, %s153
        $region24: #{tpu_custom_call.1} parent=15 // pred_fallthru
          _
      $region16: #{tpu_custom_call.1} parent=5 // pred_fallthru
        _
      %p168 = scmp.le.s32.totalorder 1, %s17
      %p169 = scmp.lt.s32.totalorder %s17, 3
      %p170 = pnand %p168, %p169
      %p171 = pneg %p170
      // Predicated region
      $region25: #{tpu_custom_call.1} parent=5 // pred_check
        _
      $region26: #{tpu_custom_call.1} parent=5 // pred_check_branch
        %173 = sbr.rel (%p170) target = $region28
      $region27: #{tpu_custom_call.1} parent=5 // pred_region
        %s174 = ssub.s32 %s17, 1
        %s175 = sand.u32 %s44, 1
        %s176 = scalar_lea.sflag [#allocation4], %s175
        %s177 = sand.u32 %s44, 1
        %s178 = smul.addr %s177, 8
        %s179 = scalar_lea.vmem [#allocation3], %s178
        // Predicated region
        $region29: #{tpu_custom_call.1} parent=27 // pred_check
          %p180 = pneg %p57
        $region30: #{tpu_custom_call.1} parent=27 // pred_check_branch
          %182 = sbr.rel (%p180) target = $region32
        $region31: #{tpu_custom_call.1} parent=27 // pred_region
          %183 = dma.done %s176, 128
        $region32: #{tpu_custom_call.1} parent=27 // pred_fallthru
          _
        %s184 = sand.u32 %s72, 1
        %s185 = scalar_lea.sflag [#allocation7], %s184
        %s186 = sand.u32 %s72, 1
        %s187 = smul.addr %s186, 8
        %s188 = scalar_lea.vmem [#allocation6], %s187
        // Predicated region
        $region33: #{tpu_custom_call.1} parent=27 // pred_check
          %p189 = pneg %p85
        $region34: #{tpu_custom_call.1} parent=27 // pred_check_branch
          %191 = sbr.rel (%p189) target = $region36
        $region35: #{tpu_custom_call.1} parent=27 // pred_region
          %192 = dma.done %s185, 128
        $region36: #{tpu_custom_call.1} parent=27 // pred_fallthru
          _
        %s193 = sand.u32 %s44, 1
        %s194 = scalar_lea.sflag [#allocation4], %s193
        %s195 = sand.u32 %s44, 1
        %s196 = smul.addr %s195, 8
        %s197 = scalar_lea.vmem [#allocation3], %s196
        %p198 = pneg %p57
        %p199 = pneg %p54
        %s200 = sand.u32 %s72, 1
        %s201 = scalar_lea.sflag [#allocation7], %s200
        %s202 = sand.u32 %s72, 1
        %s203 = smul.addr %s202, 8
        %s204 = scalar_lea.vmem [#allocation6], %s203
        %p205 = pneg %p85
        %p206 = pneg %p82
        %p207 = pneg %p111
        %p208 = pneg %p108
        %s209 = sand.u32 %s98, 1
        %s210 = scalar_lea.sflag [#allocation5], %s209
        %s211 = sand.u32 %s98, 1
        %s212 = scalar_lea.vmem [#allocation8], %s211
        %s213 = sadd.s32 %s26, %s27
        %s214 = sadd.s32 %s26, %s27
        %p215 = scmp.eq.s32.totalorder %s27, 0
        // Predicated region
        $region37: #{tpu_custom_call.1} parent=27 // pred_check
          %p216 = pneg %p215
        $region38: #{tpu_custom_call.1} parent=27 // pred_check_branch
          %218 = sbr.rel (%p216) target = $region40
        $region39: #{tpu_custom_call.1} parent=27 // pred_region
          %219 = vst [vmem:[#allocation2] sm:$0x1] 0.0
        $region40: #{tpu_custom_call.1} parent=27 // pred_fallthru
          _
        %v220 = vld [vmem:[%s179] sm:$0xff]
        %v221 = vld [vmem:[%s188] sm:$0xff]
        %v222 = vsub.f32 %v220, %v221
        %v223 = vmul.f32 %v222, 6.2831855
        %v224 = vand.u32 2147483647, %v223
        %v225 = vmul.f32 %v224, 0.15915494
        %v226 = vfloor.f32 %v225
        %v227 = vmul.f32 %v226, 6.2831855
        %v228 = vsub.f32 %v224, %v227
        %vm229 = vcmp.gt.f32.partialorder %v228, 3.1415927
        %v230 = vsub.f32 6.2831855, %v228
        %v231 = vsel %vm229, %v230, %v228
        %v232 = vld [vmem:[#allocation2] sm:$0x1]
        %v233 = vmul.f32 %v231, %v231
        %v234 = vrot.slane %v233, 4
        %v235 = vadd.f32 %v233, %v234
        %v236 = vrot.slane %v235, 2
        %v237 = vadd.f32 %v235, %v236
        %v238 = vrot.slane %v237, 1
        %v239 = vadd.f32 %v237, %v238
        %v240 = vadd.f32 %v232, %v239
        %241 = vst [vmem:[#allocation2] sm:$0x1] %v240
        // Predicated region
        $region41: #{tpu_custom_call.1} parent=27 // pred_check
          %p242 = pneg %p215
        $region42: #{tpu_custom_call.1} parent=27 // pred_check_branch
          %244 = sbr.rel (%p242) target = $region44
        $region43: #{tpu_custom_call.1} parent=27 // pred_region
          %v245 = vld [vmem:[#allocation2] sm:$0x1]
          %246 = vst [vmem:[%s212] sm:$0x1] %v245
        $region44: #{tpu_custom_call.1} parent=27 // pred_fallthru
          _
        %s247 = sand.u32 %s98, 1
        %s248 = scalar_lea.sflag [#allocation5], %s247
        %s249 = sand.u32 %s98, 1
        %s250 = scalar_lea.vmem [#allocation8], %s249
        // Predicated region
        $region45: #{tpu_custom_call.1} parent=27 // pred_check
          %p251 = pneg %p108
        $region46: #{tpu_custom_call.1} parent=27 // pred_check_branch
          %253 = sbr.rel (%p251) target = $region48
        $region47: #{tpu_custom_call.1} parent=27 // pred_region
          %s255 = ssub.s32 16, 16
          %256 = vsyncadd %s248, %s255
          %s257 = smul.addr %s26, 16
          %s258 = scalar_lea.hbm %s2, %s257
          %s260 = sshll.u32 %s250, 4
          %s261 = int_to_ptr.vmem [resolvable:$true] %s260
          %263 = dma.vmem_to_hbm [thread:$0]  %s261, 16, %s258, %s248
        $region48: #{tpu_custom_call.1} parent=27 // pred_fallthru
          _
      $region28: #{tpu_custom_call.1} parent=5 // pred_fallthru
        _
      %p264 = scmp.le.s32.totalorder 2, %s17
      // Predicated region
      $region49: #{tpu_custom_call.1} parent=5 // pred_check
        %p265 = pneg %p264
      $region50: #{tpu_custom_call.1} parent=5 // pred_check_branch
        %267 = sbr.rel (%p265) target = $region52
      $region51: #{tpu_custom_call.1} parent=5 // pred_region
        %s268 = ssub.s32 %s17, 2
        // Predicated region
        $region53: #{tpu_custom_call.1} parent=51 // pred_check
          %p269 = pneg %p114
        $region54: #{tpu_custom_call.1} parent=51 // pred_check_branch
          %271 = sbr.rel (%p269) target = $region56
        $region55: #{tpu_custom_call.1} parent=51 // pred_region
          %s272 = sand.u32 %s99, 1
          %s273 = scalar_lea.sflag [#allocation5], %s272
          %s274 = sand.u32 %s99, 1
          %s275 = scalar_lea.vmem [#allocation8], %s274
          %276 = dma.done %s273, 16
        $region56: #{tpu_custom_call.1} parent=51 // pred_fallthru
          _
      $region52: #{tpu_custom_call.1} parent=5 // pred_fallthru
        _
    $region6: #{tpu_custom_call.1} parent=1 // loop_footer
      %s21 = sadd.s32 1, %s17
    $region7: #{tpu_custom_call.1} parent=1 // loop_footer_branch
      %16 = sbr.rel target = $region3
    $region8: #{tpu_custom_call.1} parent=1 // loop_exit
      _
    %277 = vsyncpa [#allocation4], 1
    %s278 = scalar_lea.sflag [#allocation4], 1
    %279 = vsyncpa %s278, 1
    %280 = vsyncpa [#allocation7], 1
    %s281 = scalar_lea.sflag [#allocation7], 1
    %282 = vsyncpa %s281, 1
    %283 = vsyncpa [#allocation5], 1
    %s284 = scalar_lea.sflag [#allocation5], 1
    %285 = vsyncpa %s284, 1

</llo_original>
